<compile_context>
chip_gen: v6e
topology: v6e:2x2x1
jax: 0.10.0
libtpu: 0.0.40
codegen_flags: <defaults>
</compile_context>

<pallas_src>
import functools

import jax
import jax.numpy as jnp
from jax.experimental import pallas as pl
from jax.experimental.pallas import tpu as pltpu


def _round_up(x, m):
    return (x + m - 1) // m * m


def _vmem_budget_bytes():
    """Per-core VMEM budget with headroom (v7x has only 64 MiB per TC)."""
    cap = 64 << 20  # conservative default = v7x per-TensorCore VMEM
    try:
        info = pltpu.get_tpu_info()
        cap = int(getattr(info, "vmem_capacity_bytes", cap))
    except Exception:
        pass
    return (cap * 3) // 4  # leave ~25% for pipeline-internal buffers / scratch


def _tile_footprint_bytes(tm, th, dim_p, out_p, bpe_x, bpe_c, bpe_o):
    """Estimated VMEM footprint for one pipeline configuration."""
    return (2 * tm * dim_p * bpe_x        # x row tile (double-buffered)
            + 2 * dim_p * th * bpe_c      # w1 slice
            + 2 * th * out_p * bpe_c      # w2 slice
            + 2 * tm * out_p * bpe_o      # output tile
            + tm * out_p * 4              # f32 accumulator scratch
            + tm * th * 6                 # f32 relu(h)^2 intermediate + bf16 copy
            + 2 * out_p * 4)              # colsum(w2) row


def _plan_tiles(M128, hid_p, dim_p, out_p, tm_max, bpe_x, bpe_c, bpe_o, budget):
    """Pick (tm, th).  Preference order:
       1. weights fully VMEM-resident (th == hid_p -> fetched once per kernel),
       2. >=2 (and even) row tiles so v7x's two TCs share the 'parallel' axis,
       3. large tm (amortizes weight re-streaming and per-grid-step overhead).
    """
    tm_max = max(128, _round_up(min(tm_max, M128), 128))
    tm_cands = [c for c in range(128, tm_max + 1, 128) if M128 % c == 0]
    if not tm_cands:
        tm_cands = [min(tm_max, M128)]

    def _pref(c):
        n = M128 // c
        cls = 0 if (n >= 2 and n % 2 == 0) else (1 if n >= 2 else 2)
        return (cls, -c)

    tm_cands = sorted(tm_cands, key=_pref)

    # 1) Try weights resident (hidden axis not streamed).
    for tm in tm_cands:
        if _tile_footprint_bytes(tm, hid_p, dim_p, out_p,
                                 bpe_x, bpe_c, bpe_o) <= budget:
            return tm, hid_p

    # 2) Stream the hidden axis: keep tm large, pick the largest th that fits
    #    (large th also keeps the strided w1 column-slice DMAs efficient).
    th_cands = sorted((c for c in range(128, hid_p + 1, 128) if hid_p % c == 0),
                      reverse=True)
    for tm in tm_cands:
        for th in th_cands:
            if _tile_footprint_bytes(tm, th, dim_p, out_p,
                                     bpe_x, bpe_c, bpe_o) <= budget:
                return tm, th

    # Last resort (tiny budget): smallest tiles; may spill but stays correct.
    return min(tm_cands), 128


def _mlp_kernel(scale_ref, bias_ref, x_ref, w1_ref, w2_ref, csum_ref,
                o_ref, acc_ref, *, compute_dtype):
    k = pl.program_id(1)

    @pl.when(k == 0)
    def _():
        acc_ref[...] = jnp.zeros_like(acc_ref)

    # Cast in VMEM (no-op if x was pre-padded/cast); avoids an HBM pre-pass.
    x = x_ref[...].astype(compute_dtype)
    # fc1 chunk: (tm, dim_p) @ (dim_p, th) -> (tm, th), f32 accumulation on MXU.
    h = jnp.dot(x, w1_ref[...], preferred_element_type=jnp.float32)
    # StarReLU with scale/bias hoisted out of the hidden axis:
    #   (s*relu(h)^2 + b) @ w2 == s * (relu(h)^2 @ w2) + b * colsum(w2)
    r = jnp.maximum(h, 0.0)
    r2 = (r * r).astype(compute_dtype)
    # drop1 / drop2 are identity for p = 0 (module default / eval).
    # fc2 chunk: (tm, th) @ (th, out_p) accumulated into f32 scratch.
    acc_ref[...] += jnp.dot(r2, w2_ref[...], preferred_element_type=jnp.float32)

    @pl.when(k == pl.num_programs(1) - 1)
    def _():
        o = scale_ref[0] * acc_ref[...] + bias_ref[0] * csum_ref[...]
        o_ref[...] = o.astype(o_ref.dtype)


def prepare_mlp_params(w1, w2, compute_dtype=jnp.bfloat16):
    """One-time weight prep (hoist out of the per-call path): cast + pad to a
    lane-dense (multiple-of-128) layout and precompute colsum(w2) for the
    StarReLU bias hoist.  Padding is exact: padded hidden rows of w2 are zero,
    so padded-hidden activations never contribute."""
    dim, hidden = w1.shape
    out_f = w2.shape[1]
    dim_p, hid_p, out_p = (_round_up(d, 128) for d in (dim, hidden, out_f))
    w1p = jnp.pad(w1.astype(compute_dtype),
                  ((0, dim_p - dim), (0, hid_p - hidden)))
    w2p = jnp.pad(w2.astype(compute_dtype),
                  ((0, hid_p - hidden), (0, out_p - out_f)))
    colsum = jnp.sum(w2.astype(jnp.float32), axis=0)
    colsum = jnp.pad(colsum, (0, out_p - out_f)).reshape(1, out_p)
    return w1p, w2p, colsum


@functools.partial(jax.jit,
                   static_argnames=("out_features", "tm_max", "compute_dtype"))
def mlp_forward(x, w1p, w2p, w2_colsum, scale, bias, *, out_features,
                tm_max=1024, compute_dtype=jnp.bfloat16):
    """x: (B, N, dim); w1p/w2p/w2_colsum from prepare_mlp_params; scale/bias: (1,)."""
    B, N, dim = x.shape
    dim_p, hid_p = w1p.shape
    out_p = w2p.shape[1]
    M = B * N
    M128 = _round_up(M, 128)

    bpe_c = jnp.dtype(compute_dtype).itemsize
    bpe_o = jnp.dtype(x.dtype).itemsize
    needs_x_pad = (dim != dim_p) or (M != M128)
    bpe_x = bpe_c if needs_x_pad else jnp.dtype(x.dtype).itemsize

    budget = _vmem_budget_bytes()
    tm, th = _plan_tiles(M128, hid_p, dim_p, out_p, tm_max,
                         bpe_x, bpe_c, bpe_o, budget)
    n_rows = M128 // tm
    n_k = hid_p // th

    x2 = x.reshape(M, dim)
    if needs_x_pad:
        # Single fused pad+cast pass over x (padding is exact; padded K columns
        # are zero, padded rows are sliced off below).
        x2 = jnp.pad(x2.astype(compute_dtype),
                     ((0, M128 - M), (0, dim_p - dim)))
    # else: x is passed in its native dtype and cast in VMEM inside the kernel.

    footprint = _tile_footprint_bytes(tm, th, dim_p, out_p, bpe_x, bpe_c, bpe_o)
    vmem_limit = int(min(budget, max(2 * footprint, 32 << 20)))

    flops = 2 * M128 * (dim_p * hid_p + hid_p * out_p)
    w_bytes = (w1p.size + w2p.size) * bpe_c
    bytes_accessed = int(x2.size * jnp.dtype(x2.dtype).itemsize
                         + M128 * out_p * bpe_o
                         + (w_bytes if n_k == 1 else n_rows * w_bytes)
                         + w2_colsum.size * 4)

    kernel = functools.partial(_mlp_kernel, compute_dtype=compute_dtype)

    y2 = pl.pallas_call(
        kernel,
        out_shape=jax.ShapeDtypeStruct((M128, out_p), x.dtype),
        grid_spec=pltpu.PrefetchScalarGridSpec(
            num_scalar_prefetch=0,
            grid=(n_rows, n_k),
            in_specs=[
                # StarReLU scalar params live in SMEM.
                pl.BlockSpec(memory_space=pltpu.MemorySpace.SMEM),
                pl.BlockSpec(memory_space=pltpu.MemorySpace.SMEM),
                # Row tile of activations (constant over k -> fetched once/row).
                pl.BlockSpec((tm, dim_p), lambda i, k: (i, 0)),
                # Weight slices: when n_k == 1 these index_maps are constant
                # over the whole grid -> weights DMA'd exactly once per kernel.
                pl.BlockSpec((dim_p, th), lambda i, k: (0, k)),
                pl.BlockSpec((th, out_p), lambda i, k: (k, 0)),
                # colsum(w2) for the hoisted StarReLU bias term.
                pl.BlockSpec((1, out_p), lambda i, k: (0, 0)),
            ],
            out_specs=pl.BlockSpec((tm, out_p), lambda i, k: (i, 0)),
            scratch_shapes=[pltpu.VMEM((tm, out_p), jnp.float32)],
        ),
        compiler_params=pltpu.CompilerParams(
            dimension_semantics=("parallel", "arbitrary"),
            vmem_limit_bytes=vmem_limit,
        ),
        cost_estimate=pl.CostEstimate(
            flops=flops, transcendentals=0, bytes_accessed=bytes_accessed),
    )(scale, bias, x2, w1p, w2p, w2_colsum)

    return y2[:M, :out_features].reshape(B, N, out_features)


if __name__ == "__main__":
    # Small shapes consistent with the module: dim=32, mlp_ratio=4 -> hidden=128.
    B, N, dim = 2, 64, 32
    mlp_ratio = 4
    hidden = int(mlp_ratio * dim)
    out_f = dim  # out_features defaults to in_features

    key = jax.random.PRNGKey(0)
    kx, k1, k2 = jax.random.split(key, 3)

    x = jax.random.normal(kx, (B, N, dim), dtype=jnp.float32)
    # torch Linear stores (out, in); we keep (in, out) so the kernel does x @ W.
    w1 = jax.random.normal(k1, (dim, hidden), dtype=jnp.float32) * 0.02
    w2 = jax.random.normal(k2, (hidden, out_f), dtype=jnp.float32) * 0.02
    # StarReLU learnable scalars (non-default values to exercise both params).
    scale = jnp.full((1,), 1.5, dtype=jnp.float32)
    bias = jnp.full((1,), 0.1, dtype=jnp.float32)

    # One-time weight prep, hoisted out of the per-call path.
    w1p, w2p, w2_colsum = prepare_mlp_params(w1, w2)

    y = mlp_forward(x, w1p, w2p, w2_colsum, scale, bias, out_features=out_f)
    jax.block_until_ready(y)

    # Pure-JAX f32 reference: fc1 -> StarReLU -> drop(p=0) -> fc2 -> drop(p=0).
    h = jnp.einsum("bnd,dh->bnh", x, w1)
    a = scale[0] * jnp.maximum(h, 0.0) ** 2 + bias[0]
    y_ref = jnp.einsum("bnh,ho->bno", a, w2)

    assert y.shape == (B, N, out_f)
    assert jnp.allclose(y, y_ref, atol=1e-2, rtol=1e-2), "mismatch vs reference"

    print("KERNEL_OK")
</pallas_src>

<mosaic_0001>
module attributes {stable_mosaic.version = 11 : i64} {
  func.func @_mlp_kernel(%arg0: i32, %arg1: i32, %arg2: memref<1xf32, #tpu.memory_space<smem>>, %arg3: memref<1xf32, #tpu.memory_space<smem>>, %arg4: memref<128x128xbf16, #tpu.memory_space<vmem>>, %arg5: memref<128x128xbf16, #tpu.memory_space<vmem>>, %arg6: memref<128x128xbf16, #tpu.memory_space<vmem>>, %arg7: memref<1x128xf32, #tpu.memory_space<vmem>>, %arg8: memref<128x128xf32, #tpu.memory_space<vmem>>, %arg9: memref<128x128xf32, #tpu.memory_space<vmem>>) attributes {dimension_semantics = [#tpu.dimension_semantics<parallel>, #tpu.dimension_semantics<arbitrary>], iteration_bounds = array<i64: 1, 1>, scalar_prefetch = 0 : i64, scratch_operands = 1 : i64, tpu.core_type = #tpu.core_type<tc>, window_params = [{transform_indices = @transform_0, window_bounds = array<i64: 1>}, {transform_indices = @transform_1, window_bounds = array<i64: 1>}, {transform_indices = @transform_2, window_bounds = array<i64: 128, 128>}, {transform_indices = @transform_3, window_bounds = array<i64: 128, 128>}, {transform_indices = @transform_4, window_bounds = array<i64: 128, 128>}, {pipeline_mode = #tpu.pipeline_mode<synchronous>, transform_indices = @transform_5, window_bounds = array<i64: 1, 128>}, {transform_indices = @transform_6, window_bounds = array<i64: 128, 128>}]} {
    %c0_i32 = arith.constant 0 : i32
    %0 = arith.cmpi eq, %arg1, %c0_i32 : i32
    %1 = arith.extui %0 : i1 to i32
    %c0_i32_0 = arith.constant 0 : i32
    %2 = arith.cmpi ne, %1, %c0_i32_0 : i32
    scf.if %2 {
      %cst_14 = arith.constant 0.000000e+00 : f32
      %18 = vector.broadcast %cst_14 : f32 to vector<128x128xf32>
      %c0_15 = arith.constant 0 : index
      %c0_16 = arith.constant 0 : index
      %19 = vector.load %arg9[%c0_15, %c0_16] : memref<128x128xf32, #tpu.memory_space<vmem>>, vector<128x128xf32>
      tpu.vector_store %arg9[%c0_15, %c0_16], %18 {strides = array<i32>} : memref<128x128xf32, #tpu.memory_space<vmem>>, vector<128x128xf32>,
    } else {
    }
    %c0 = arith.constant 0 : index
    %c0_1 = arith.constant 0 : index
    %3 = vector.load %arg4[%c0, %c0_1] : memref<128x128xbf16, #tpu.memory_space<vmem>>, vector<128x128xbf16>
    %c0_2 = arith.constant 0 : index
    %c0_3 = arith.constant 0 : index
    %4 = vector.load %arg5[%c0_2, %c0_3] : memref<128x128xbf16, #tpu.memory_space<vmem>>, vector<128x128xbf16>
    %cst = arith.constant dense<0.000000e+00> : vector<128x128xf32>
    %5 = tpu.matmul %3, %4, %cst {dimension_numbers = #tpu.dot_dimension_numbers<[1], [0], [0], [1], [0, 0, 1, 1], [], []>} : vector<128x128xbf16>, vector<128x128xbf16>, vector<128x128xf32> -> vector<128x128xf32>
    %cst_4 = arith.constant 0.000000e+00 : f32
    %6 = vector.broadcast %cst_4 : f32 to vector<128x128xf32>
    %7 = arith.maximumf %5, %6 : vector<128x128xf32>
    %8 = arith.mulf %7, %7 : vector<128x128xf32>
    %9 = arith.truncf %8 : vector<128x128xf32> to vector<128x128xbf16>
    %c0_5 = arith.constant 0 : index
    %c0_6 = arith.constant 0 : index
    %10 = vector.load %arg9[%c0_5, %c0_6] : memref<128x128xf32, #tpu.memory_space<vmem>>, vector<128x128xf32>
    %c0_7 = arith.constant 0 : index
    %c0_8 = arith.constant 0 : index
    %11 = vector.load %arg6[%c0_7, %c0_8] : memref<128x128xbf16, #tpu.memory_space<vmem>>, vector<128x128xbf16>
    %cst_9 = arith.constant dense<0.000000e+00> : vector<128x128xf32>
    %12 = tpu.matmul %9, %11, %cst_9 {dimension_numbers = #tpu.dot_dimension_numbers<[1], [0], [0], [1], [0, 0, 1, 1], [], []>} : vector<128x128xbf16>, vector<128x128xbf16>, vector<128x128xf32> -> vector<128x128xf32>
    %13 = arith.addf %10, %12 : vector<128x128xf32>
    %c0_10 = arith.constant 0 : index
    %c0_11 = arith.constant 0 : index
    %14 = vector.load %arg9[%c0_10, %c0_11] : memref<128x128xf32, #tpu.memory_space<vmem>>, vector<128x128xf32>
    tpu.vector_store %arg9[%c0_10, %c0_11], %13 {strides = array<i32>} : memref<128x128xf32, #tpu.memory_space<vmem>>, vector<128x128xf32>,
    %c0_i32_12 = arith.constant 0 : i32
    %15 = arith.cmpi eq, %arg1, %c0_i32_12 : i32
    %16 = arith.extui %15 : i1 to i32
    %c0_i32_13 = arith.constant 0 : i32
    %17 = arith.cmpi ne, %16, %c0_i32_13 : i32
    scf.if %17 {
      %c0_14 = arith.constant 0 : index
      %18 = memref.load %arg2[%c0_14] : memref<1xf32, #tpu.memory_space<smem>>
      %c0_15 = arith.constant 0 : index
      %c0_16 = arith.constant 0 : index
      %19 = vector.load %arg9[%c0_15, %c0_16] : memref<128x128xf32, #tpu.memory_space<vmem>>, vector<128x128xf32>
      %20 = vector.broadcast %18 : f32 to vector<128x128xf32>
      %21 = arith.mulf %20, %19 : vector<128x128xf32>
      %c0_17 = arith.constant 0 : index
      %22 = memref.load %arg3[%c0_17] : memref<1xf32, #tpu.memory_space<smem>>
      %c0_18 = arith.constant 0 : index
      %c0_19 = arith.constant 0 : index
      %23 = vector.load %arg7[%c0_18, %c0_19] : memref<1x128xf32, #tpu.memory_space<vmem>>, vector<1x128xf32>
      %24 = vector.broadcast %22 : f32 to vector<1x128xf32>
      %25 = arith.mulf %24, %23 : vector<1x128xf32>
      %26 = vector.broadcast %25 : vector<1x128xf32> to vector<128x128xf32>
      %27 = arith.addf %21, %26 : vector<128x128xf32>
      %c0_20 = arith.constant 0 : index
      %c0_21 = arith.constant 0 : index
      %28 = vector.load %arg8[%c0_20, %c0_21] : memref<128x128xf32, #tpu.memory_space<vmem>>, vector<128x128xf32>
      tpu.vector_store %arg8[%c0_20, %c0_21], %27 {strides = array<i32>} : memref<128x128xf32, #tpu.memory_space<vmem>>, vector<128x128xf32>,
    } else {
    }
    return
  }
  func.func @transform_0(%arg0: i32, %arg1: i32) -> i32 {
    %c0_i32 = arith.constant 0 : i32
    %c0_i32_0 = arith.constant 0 : i32
    return %c0_i32 : i32
  }
  func.func @transform_1(%arg0: i32, %arg1: i32) -> i32 {
    %c0_i32 = arith.constant 0 : i32
    %c0_i32_0 = arith.constant 0 : i32
    return %c0_i32 : i32
  }
  func.func @transform_2(%arg0: i32, %arg1: i32) -> (i32, i32) {
    %c0_i32 = arith.constant 0 : i32
    %c0_i32_0 = arith.constant 0 : i32
    return %arg0, %c0_i32 : i32, i32
  }
  func.func @transform_3(%arg0: i32, %arg1: i32) -> (i32, i32) {
    %c0_i32 = arith.constant 0 : i32
    %c0_i32_0 = arith.constant 0 : i32
    return %c0_i32, %arg1 : i32, i32
  }
  func.func @transform_4(%arg0: i32, %arg1: i32) -> (i32, i32) {
    %c0_i32 = arith.constant 0 : i32
    %c0_i32_0 = arith.constant 0 : i32
    return %arg1, %c0_i32 : i32, i32
  }
  func.func @transform_5(%arg0: i32, %arg1: i32) -> (i32, i32) {
    %c0_i32 = arith.constant 0 : i32
    %c0_i32_0 = arith.constant 0 : i32
    %c0_i32_1 = arith.constant 0 : i32
    return %c0_i32, %c0_i32_0 : i32, i32
  }
  func.func @transform_6(%arg0: i32, %arg1: i32) -> (i32, i32) {
    %c0_i32 = arith.constant 0 : i32
    %c0_i32_0 = arith.constant 0 : i32
    return %arg0, %c0_i32 : i32, i32
  }
}

</mosaic_0001>

<llo_original>
// kernel: mlp_forward.1
$region0: #{mlp_forward.1}
  #allocation0 [shape = 'u32[]', space=smem, size = 0x4, offset = 0x4, fixed_abs, tag = 'smem constant byte address 0x4 - core index']
  #allocation1 [shape = 'u32[144,128]{1,0:T(1,128)}', space=vmem, size = 0x12000, scoped, tag = 'internal scratch']
  #allocation2 [shape = 'f32[128,128]{1,0:T(8,128)}', space=vmem, size = 0x10000, scoped, tag = 'scratch operand']
  #allocation3 [shape = 'f32[1]{0:T(128)S(6)}', space=smem, size = 0x200, scoped, tag = 'scoped memory for mlp_forward.1']
  #allocation4 [shape = 'f32[1]{0:T(128)S(6)}', space=smem, size = 0x200, scoped, tag = 'scoped memory for mlp_forward.1']
  %s0 = inlined_call_operand.<no memory space> [shape: f32[1], index: 0, kind: input, shape index: {}]
  %s1 = inlined_call_operand.<no memory space> [shape: f32[1], index: 1, kind: input, shape index: {}]
  %s2 = inlined_call_operand.vmem [shape: bf16[128,128], index: 2, kind: input, shape index: {}]
  %s3 = inlined_call_operand.vmem [shape: bf16[128,128], index: 3, kind: input, shape index: {}]
  %s4 = inlined_call_operand.vmem [shape: bf16[128,128], index: 4, kind: input, shape index: {}]
  %s5 = inlined_call_operand.vmem [shape: f32[1,128], index: 5, kind: input, shape index: {}]
  %s6 = inlined_call_operand.vmem [shape: f32[128,128], index: 6, kind: output, shape index: {}]
  %s7 = sld [smem:[#allocation0]]
  $region42: #{mlp_forward.1} parent=0
    _
  %s9 = ssub.s32 1, %s7
  %s10 = scalar_select 0, %s9, %s7
  %11 = sst [smem:[#allocation3]] %s0
  %12 = sst [smem:[#allocation4]] %s1
  // Predicated region
  $region2: #{mlp_forward.1} parent=0 // pred_check
    _
  $region3: #{mlp_forward.1} parent=0 // pred_check_branch
    %14 = sbr.rel (0) target = $region5
  $region4: #{mlp_forward.1} parent=0 // pred_region
    _
  $region5: #{mlp_forward.1} parent=0 // pred_fallthru
    _
  // Predicated region
  $region6: #{mlp_forward.1} parent=0 // pred_check
    _
  $region7: #{mlp_forward.1} parent=0 // pred_check_branch
    %16 = sbr.rel (0) target = $region9
  $region8: #{mlp_forward.1} parent=0 // pred_region
    _
  $region9: #{mlp_forward.1} parent=0 // pred_fallthru
    _
  // Predicated region
  $region10: #{mlp_forward.1} parent=0 // pred_check
    _
  $region11: #{mlp_forward.1} parent=0 // pred_check_branch
    %18 = sbr.rel (0) target = $region13
  $region12: #{mlp_forward.1} parent=0 // pred_region
    _
  $region13: #{mlp_forward.1} parent=0 // pred_fallthru
    _
  // Predicated region
  $region14: #{mlp_forward.1} parent=0 // pred_check
    _
  $region15: #{mlp_forward.1} parent=0 // pred_check_branch
    %20 = sbr.rel (0) target = $region17
  $region16: #{mlp_forward.1} parent=0 // pred_region
    _
  $region17: #{mlp_forward.1} parent=0 // pred_fallthru
    _
  // Predicated region
  $region18: #{mlp_forward.1} parent=0 // pred_check
    _
  $region19: #{mlp_forward.1} parent=0 // pred_check_branch
    %22 = sbr.rel (0) target = $region21
  $region20: #{mlp_forward.1} parent=0 // pred_region
    _
  $region21: #{mlp_forward.1} parent=0 // pred_fallthru
    _
  // Predicated region
  $region22: #{mlp_forward.1} parent=0 // pred_check
    _
  $region23: #{mlp_forward.1} parent=0 // pred_check_branch
    %24 = sbr.rel (0) target = $region25
  $region24: #{mlp_forward.1} parent=0 // pred_region
    _
  $region25: #{mlp_forward.1} parent=0 // pred_fallthru
    _
  %p26 = scmp.eq.s32.totalorder 0, 0
  // Predicated region
  $region26: #{mlp_forward.1} parent=0 // pred_check
    %p27 = pneg %p26
  $region27: #{mlp_forward.1} parent=0 // pred_check_branch
    %29 = sbr.rel (%p27) target = $region29
  $region28: #{mlp_forward.1} parent=0 // pred_region
    %30 = vst [vmem:[#allocation2] sm:$0xff] 0.0
    %31 = vst [vmem:[#allocation2 + $0x8] sm:$0xff] 0.0
    %32 = vst [vmem:[#allocation2 + $0x10] sm:$0xff] 0.0
    %33 = vst [vmem:[#allocation2 + $0x18] sm:$0xff] 0.0
    %34 = vst [vmem:[#allocation2 + $0x20] sm:$0xff] 0.0
    %35 = vst [vmem:[#allocation2 + $0x28] sm:$0xff] 0.0
    %36 = vst [vmem:[#allocation2 + $0x30] sm:$0xff] 0.0
    %37 = vst [vmem:[#allocation2 + $0x38] sm:$0xff] 0.0
    %38 = vst [vmem:[#allocation2 + $0x40] sm:$0xff] 0.0
    %39 = vst [vmem:[#allocation2 + $0x48] sm:$0xff] 0.0
    %40 = vst [vmem:[#allocation2 + $0x50] sm:$0xff] 0.0
    %41 = vst [vmem:[#allocation2 + $0x58] sm:$0xff] 0.0
    %42 = vst [vmem:[#allocation2 + $0x60] sm:$0xff] 0.0
    %43 = vst [vmem:[#allocation2 + $0x68] sm:$0xff] 0.0
    %44 = vst [vmem:[#allocation2 + $0x70] sm:$0xff] 0.0
    %45 = vst [vmem:[#allocation2 + $0x78] sm:$0xff] 0.0
  $region29: #{mlp_forward.1} parent=0 // pred_fallthru
    _
  %v46 = vld [vmem:[%s2] sm:$0xf]
  %v47 = vld [vmem:[%s2 + $0x4] sm:$0xf]
  %v48 = vld [vmem:[%s2 + $0x8] sm:$0xf]
  %v49 = vld [vmem:[%s2 + $0xc] sm:$0xf]
  %v50 = vld [vmem:[%s2 + $0x10] sm:$0xf]
  %v51 = vld [vmem:[%s2 + $0x14] sm:$0xf]
  %v52 = vld [vmem:[%s2 + $0x18] sm:$0xf]
  %v53 = vld [vmem:[%s2 + $0x1c] sm:$0xf]
  %v54 = vld [vmem:[%s2 + $0x20] sm:$0xf]
  %v55 = vld [vmem:[%s2 + $0x24] sm:$0xf]
  %v56 = vld [vmem:[%s2 + $0x28] sm:$0xf]
  %v57 = vld [vmem:[%s2 + $0x2c] sm:$0xf]
  %v58 = vld [vmem:[%s2 + $0x30] sm:$0xf]
  %v59 = vld [vmem:[%s2 + $0x34] sm:$0xf]
  %v60 = vld [vmem:[%s2 + $0x38] sm:$0xf]
  %v61 = vld [vmem:[%s2 + $0x3c] sm:$0xf]
  %v62 = vld [vmem:[%s3] sm:$0xf]
  %v63 = vld [vmem:[%s3 + $0x4] sm:$0xf]
  %v64 = vld [vmem:[%s3 + $0x8] sm:$0xf]
  %v65 = vld [vmem:[%s3 + $0xc] sm:$0xf]
  %v66 = vld [vmem:[%s3 + $0x10] sm:$0xf]
  %v67 = vld [vmem:[%s3 + $0x14] sm:$0xf]
  %v68 = vld [vmem:[%s3 + $0x18] sm:$0xf]
  %v69 = vld [vmem:[%s3 + $0x1c] sm:$0xf]
  %v70 = vld [vmem:[%s3 + $0x20] sm:$0xf]
  %v71 = vld [vmem:[%s3 + $0x24] sm:$0xf]
  %v72 = vld [vmem:[%s3 + $0x28] sm:$0xf]
  %v73 = vld [vmem:[%s3 + $0x2c] sm:$0xf]
  %v74 = vld [vmem:[%s3 + $0x30] sm:$0xf]
  %v75 = vld [vmem:[%s3 + $0x34] sm:$0xf]
  %v76 = vld [vmem:[%s3 + $0x38] sm:$0xf]
  %v77 = vld [vmem:[%s3 + $0x3c] sm:$0xf]
  %v94 = vunpack.c.l.b16 %v46
  %v95 = vunpack.c.l.b16 %v47
  %v96 = vunpack.c.l.b16 %v48
  %v97 = vunpack.c.l.b16 %v49
  %v98 = vunpack.c.l.b16 %v50
  %v99 = vunpack.c.l.b16 %v51
  %v100 = vunpack.c.l.b16 %v52
  %v101 = vunpack.c.l.b16 %v53
  %v102 = vunpack.c.l.b16 %v54
  %v103 = vunpack.c.l.b16 %v55
  %v104 = vunpack.c.l.b16 %v56
  %v105 = vunpack.c.l.b16 %v57
  %v106 = vunpack.c.l.b16 %v58
  %v107 = vunpack.c.l.b16 %v59
  %v108 = vunpack.c.l.b16 %v60
  %v109 = vunpack.c.l.b16 %v61
  %v110 = vpack.c.b16 %v95, %v94
  %v111 = vpack.c.b16 %v97, %v96
  %v112 = vpack.c.b16 %v99, %v98
  %v113 = vpack.c.b16 %v101, %v100
  %v114 = vpack.c.b16 %v103, %v102
  %v115 = vpack.c.b16 %v105, %v104
  %v116 = vpack.c.b16 %v107, %v106
  %v117 = vpack.c.b16 %v109, %v108
  %v142 = vunpack.c.l.b16 %v62
  %v143 = vunpack.c.l.b16 %v63
  %v144 = vunpack.c.l.b16 %v64
  %v145 = vunpack.c.l.b16 %v65
  %v146 = vunpack.c.l.b16 %v66
  %v147 = vunpack.c.l.b16 %v67
  %v148 = vunpack.c.l.b16 %v68
  %v149 = vunpack.c.l.b16 %v69
  %v150 = vunpack.c.l.b16 %v70
  %v151 = vunpack.c.l.b16 %v71
  %v152 = vunpack.c.l.b16 %v72
  %v153 = vunpack.c.l.b16 %v73
  %v154 = vunpack.c.l.b16 %v74
  %v155 = vunpack.c.l.b16 %v75
  %v156 = vunpack.c.l.b16 %v76
  %v157 = vunpack.c.l.b16 %v77
  %v158 = vpack.c.b16 %v143, %v142
  %v159 = vpack.c.b16 %v145, %v144
  %v160 = vpack.c.b16 %v147, %v146
  %v161 = vpack.c.b16 %v149, %v148
  %v162 = vpack.c.b16 %v151, %v150
  %v163 = vpack.c.b16 %v153, %v152
  %v164 = vpack.c.b16 %v155, %v154
  %v165 = vpack.c.b16 %v157, %v156
  %174 = vmatprep.subr.bf16.mxu0 0
  %175 = vmatpush1.bf16.msra.mxu0 %v165
  %176 = vmatprep.subr.bf16.mxu0 0
  %177 = vmatpush1.bf16.msra.mxu0 %v164
  %178 = vmatprep.subr.bf16.mxu0 0
  %179 = vmatpush1.bf16.msra.mxu0 %v163
  %180 = vmatprep.subr.bf16.mxu0 0
  %181 = vmatpush1.bf16.msra.mxu0 %v162
  %182 = vmatprep.subr.bf16.mxu0 0
  %183 = vmatpush1.bf16.msra.mxu0 %v161
  %184 = vmatprep.subr.bf16.mxu0 0
  %185 = vmatpush1.bf16.msra.mxu0 %v160
  %186 = vmatprep.subr.bf16.mxu0 0
  %187 = vmatpush1.bf16.msra.mxu0 %v159
  %188 = vmatprep.subr.bf16.mxu0 0
  %189 = vmatpush1.bf16.msra.mxu0 %v158
  %190 = vmatprep.subr.bf16.mxu0 0
  %191 = vmatpush2.bf16.msra.mxu0 0
  %192 = vmatprep.subr.bf16.mxu0 0
  %193 = vmatpush2.bf16.msra.mxu0 0
  %194 = vmatprep.subr.bf16.mxu0 0
  %195 = vmatpush2.bf16.msra.mxu0 0
  %196 = vmatprep.subr.bf16.mxu0 0
  %197 = vmatpush2.bf16.msra.mxu0 0
  %198 = vmatprep.subr.bf16.mxu0 0
  %199 = vmatpush2.bf16.msra.mxu0 0
  %200 = vmatprep.subr.bf16.mxu0 0
  %201 = vmatpush2.bf16.msra.mxu0 0
  %202 = vmatprep.subr.bf16.mxu0 0
  %203 = vmatpush2.bf16.msra.mxu0 0
  %204 = vmatprep.subr.bf16.mxu0 0
  %205 = vmatpush2.bf16.msra.mxu0 0
  %206 = vmatprep.mubr.bf16.mxu0 0
  %207 = vmatmul.mubr.bf16.gmra.mxu0 %v110
  %v208 = vpop.f32.mrf.mxu0
  %v209 = vadd.f32 0.0, %v208
  %v210 = vpop.f32.mrf.mxu0
  %v211 = vpop.f32.mrf.mxu0
  %v212 = vadd.f32 0.0, %v211
  %v213 = vpop.f32.mrf.mxu0
  %214 = vmatprep.mubr.bf16.mxu0 0
  %215 = vmatmul.mubr.bf16.gmra.mxu0 %v111
  %v216 = vpop.f32.mrf.mxu0
  %v217 = vadd.f32 0.0, %v216
  %v218 = vpop.f32.mrf.mxu0
  %v219 = vpop.f32.mrf.mxu0
  %v220 = vadd.f32 0.0, %v219
  %v221 = vpop.f32.mrf.mxu0
  %222 = vmatprep.mubr.bf16.mxu0 0
  %223 = vmatmul.mubr.bf16.gmra.mxu0 %v112
  %v224 = vpop.f32.mrf.mxu0
  %v225 = vadd.f32 0.0, %v224
  %v226 = vpop.f32.mrf.mxu0
  %v227 = vpop.f32.mrf.mxu0
  %v228 = vadd.f32 0.0, %v227
  %v229 = vpop.f32.mrf.mxu0
  %230 = vmatprep.mubr.bf16.mxu0 0
  %231 = vmatmul.mubr.bf16.gmra.mxu0 %v113
  %v232 = vpop.f32.mrf.mxu0
  %v233 = vadd.f32 0.0, %v232
  %v234 = vpop.f32.mrf.mxu0
  %v235 = vpop.f32.mrf.mxu0
  %v236 = vadd.f32 0.0, %v235
  %v237 = vpop.f32.mrf.mxu0
  %238 = vmatprep.mubr.bf16.mxu0 0
  %239 = vmatmul.mubr.bf16.gmra.mxu0 %v114
  %v240 = vpop.f32.mrf.mxu0
  %v241 = vadd.f32 0.0, %v240
  %v242 = vpop.f32.mrf.mxu0
  %v243 = vpop.f32.mrf.mxu0
  %v244 = vadd.f32 0.0, %v243
  %v245 = vpop.f32.mrf.mxu0
  %246 = vmatprep.mubr.bf16.mxu0 0
  %247 = vmatmul.mubr.bf16.gmra.mxu0 %v115
  %v248 = vpop.f32.mrf.mxu0
  %v249 = vadd.f32 0.0, %v248
  %v250 = vpop.f32.mrf.mxu0
  %v251 = vpop.f32.mrf.mxu0
  %v252 = vadd.f32 0.0, %v251
  %v253 = vpop.f32.mrf.mxu0
  %254 = vmatprep.mubr.bf16.mxu0 0
  %255 = vmatmul.mubr.bf16.gmra.mxu0 %v116
  %v256 = vpop.f32.mrf.mxu0
  %v257 = vadd.f32 0.0, %v256
  %v258 = vpop.f32.mrf.mxu0
  %v259 = vpop.f32.mrf.mxu0
  %v260 = vadd.f32 0.0, %v259
  %v261 = vpop.f32.mrf.mxu0
  %262 = vmatprep.mubr.bf16.mxu0 0
  %263 = vmatmul.mubr.bf16.gmra.mxu0 %v117
  %v264 = vpop.f32.mrf.mxu0
  %v265 = vadd.f32 0.0, %v264
  %v266 = vpop.f32.mrf.mxu0
  %v267 = vpop.f32.mrf.mxu0
  %v268 = vadd.f32 0.0, %v267
  %v269 = vpop.f32.mrf.mxu0
  %270 = vdwg.mxu0
  %v271 = vmax.f32 %v209, 0.0
  %v272 = vmax.f32 %v212, 0.0
  %v273 = vmax.f32 %v217, 0.0
  %v274 = vmax.f32 %v220, 0.0
  %v275 = vmax.f32 %v225, 0.0
  %v276 = vmax.f32 %v228, 0.0
  %v277 = vmax.f32 %v233, 0.0
  %v278 = vmax.f32 %v236, 0.0
  %v279 = vmax.f32 %v241, 0.0
  %v280 = vmax.f32 %v244, 0.0
  %v281 = vmax.f32 %v249, 0.0
  %v282 = vmax.f32 %v252, 0.0
  %v283 = vmax.f32 %v257, 0.0
  %v284 = vmax.f32 %v260, 0.0
  %v285 = vmax.f32 %v265, 0.0
  %v286 = vmax.f32 %v268, 0.0
  %v287 = vmul.f32 %v271, %v271
  %v288 = vmul.f32 %v272, %v272
  %v289 = vmul.f32 %v273, %v273
  %v290 = vmul.f32 %v274, %v274
  %v291 = vmul.f32 %v275, %v275
  %v292 = vmul.f32 %v276, %v276
  %v293 = vmul.f32 %v277, %v277
  %v294 = vmul.f32 %v278, %v278
  %v295 = vmul.f32 %v279, %v279
  %v296 = vmul.f32 %v280, %v280
  %v297 = vmul.f32 %v281, %v281
  %v298 = vmul.f32 %v282, %v282
  %v299 = vmul.f32 %v283, %v283
  %v300 = vmul.f32 %v284, %v284
  %v301 = vmul.f32 %v285, %v285
  %v302 = vmul.f32 %v286, %v286
  %v303 = vpack.c.bf16 %v288, %v287
  %v304 = vpack.c.bf16 %v290, %v289
  %v305 = vpack.c.bf16 %v292, %v291
  %v306 = vpack.c.bf16 %v294, %v293
  %v307 = vpack.c.bf16 %v296, %v295
  %v308 = vpack.c.bf16 %v298, %v297
  %v309 = vpack.c.bf16 %v300, %v299
  %v310 = vpack.c.bf16 %v302, %v301
  %v311 = vld [vmem:[#allocation2] sm:$0xff]
  %v312 = vld [vmem:[#allocation2 + $0x8] sm:$0xff]
  %v313 = vld [vmem:[#allocation2 + $0x10] sm:$0xff]
  %v314 = vld [vmem:[#allocation2 + $0x18] sm:$0xff]
  %v315 = vld [vmem:[#allocation2 + $0x20] sm:$0xff]
  %v316 = vld [vmem:[#allocation2 + $0x28] sm:$0xff]
  %v317 = vld [vmem:[#allocation2 + $0x30] sm:$0xff]
  %v318 = vld [vmem:[#allocation2 + $0x38] sm:$0xff]
  %v319 = vld [vmem:[#allocation2 + $0x40] sm:$0xff]
  %v320 = vld [vmem:[#allocation2 + $0x48] sm:$0xff]
  %v321 = vld [vmem:[#allocation2 + $0x50] sm:$0xff]
  %v322 = vld [vmem:[#allocation2 + $0x58] sm:$0xff]
  %v323 = vld [vmem:[#allocation2 + $0x60] sm:$0xff]
  %v324 = vld [vmem:[#allocation2 + $0x68] sm:$0xff]
  %v325 = vld [vmem:[#allocation2 + $0x70] sm:$0xff]
  %v326 = vld [vmem:[#allocation2 + $0x78] sm:$0xff]
  %v327 = vld [vmem:[%s4] sm:$0xf]
  %v328 = vld [vmem:[%s4 + $0x4] sm:$0xf]
  %v329 = vld [vmem:[%s4 + $0x8] sm:$0xf]
  %v330 = vld [vmem:[%s4 + $0xc] sm:$0xf]
  %v331 = vld [vmem:[%s4 + $0x10] sm:$0xf]
  %v332 = vld [vmem:[%s4 + $0x14] sm:$0xf]
  %v333 = vld [vmem:[%s4 + $0x18] sm:$0xf]
  %v334 = vld [vmem:[%s4 + $0x1c] sm:$0xf]
  %v335 = vld [vmem:[%s4 + $0x20] sm:$0xf]
  %v336 = vld [vmem:[%s4 + $0x24] sm:$0xf]
  %v337 = vld [vmem:[%s4 + $0x28] sm:$0xf]
  %v338 = vld [vmem:[%s4 + $0x2c] sm:$0xf]
  %v339 = vld [vmem:[%s4 + $0x30] sm:$0xf]
  %v340 = vld [vmem:[%s4 + $0x34] sm:$0xf]
  %v341 = vld [vmem:[%s4 + $0x38] sm:$0xf]
  %v342 = vld [vmem:[%s4 + $0x3c] sm:$0xf]
  %v359 = vunpack.c.l.b16 %v327
  %v360 = vunpack.c.l.b16 %v328
  %v361 = vunpack.c.l.b16 %v329
  %v362 = vunpack.c.l.b16 %v330
  %v363 = vunpack.c.l.b16 %v331
  %v364 = vunpack.c.l.b16 %v332
  %v365 = vunpack.c.l.b16 %v333
  %v366 = vunpack.c.l.b16 %v334
  %v367 = vunpack.c.l.b16 %v335
  %v368 = vunpack.c.l.b16 %v336
  %v369 = vunpack.c.l.b16 %v337
  %v370 = vunpack.c.l.b16 %v338
  %v371 = vunpack.c.l.b16 %v339
  %v372 = vunpack.c.l.b16 %v340
  %v373 = vunpack.c.l.b16 %v341
  %v374 = vunpack.c.l.b16 %v342
  %v375 = vpack.c.b16 %v360, %v359
  %v376 = vpack.c.b16 %v362, %v361
  %v377 = vpack.c.b16 %v364, %v363
  %v378 = vpack.c.b16 %v366, %v365
  %v379 = vpack.c.b16 %v368, %v367
  %v380 = vpack.c.b16 %v370, %v369
  %v381 = vpack.c.b16 %v372, %v371
  %v382 = vpack.c.b16 %v374, %v373
  %391 = vmatprep.subr.bf16.mxu0 0
  %392 = vmatpush1.bf16.msra.mxu0 %v382
  %393 = vmatprep.subr.bf16.mxu0 0
  %394 = vmatpush1.bf16.msra.mxu0 %v381
  %395 = vmatprep.subr.bf16.mxu0 0
  %396 = vmatpush1.bf16.msra.mxu0 %v380
  %397 = vmatprep.subr.bf16.mxu0 0
  %398 = vmatpush1.bf16.msra.mxu0 %v379
  %399 = vmatprep.subr.bf16.mxu0 0
  %400 = vmatpush1.bf16.msra.mxu0 %v378
  %401 = vmatprep.subr.bf16.mxu0 0
  %402 = vmatpush1.bf16.msra.mxu0 %v377
  %403 = vmatprep.subr.bf16.mxu0 0
  %404 = vmatpush1.bf16.msra.mxu0 %v376
  %405 = vmatprep.subr.bf16.mxu0 0
  %406 = vmatpush1.bf16.msra.mxu0 %v375
  %407 = vmatprep.subr.bf16.mxu0 0
  %408 = vmatpush2.bf16.msra.mxu0 0
  %409 = vmatprep.subr.bf16.mxu0 0
  %410 = vmatpush2.bf16.msra.mxu0 0
  %411 = vmatprep.subr.bf16.mxu0 0
  %412 = vmatpush2.bf16.msra.mxu0 0
  %413 = vmatprep.subr.bf16.mxu0 0
  %414 = vmatpush2.bf16.msra.mxu0 0
  %415 = vmatprep.subr.bf16.mxu0 0
  %416 = vmatpush2.bf16.msra.mxu0 0
  %417 = vmatprep.subr.bf16.mxu0 0
  %418 = vmatpush2.bf16.msra.mxu0 0
  %419 = vmatprep.subr.bf16.mxu0 0
  %420 = vmatpush2.bf16.msra.mxu0 0
  %421 = vmatprep.subr.bf16.mxu0 0
  %422 = vmatpush2.bf16.msra.mxu0 0
  %423 = vmatprep.mubr.bf16.mxu0 0
  %424 = vmatmul.mubr.bf16.gmra.mxu0 %v303
  %v425 = vpop.f32.mrf.mxu0
  %v426 = vadd.f32 0.0, %v425
  %v427 = vpop.f32.mrf.mxu0
  %v428 = vpop.f32.mrf.mxu0
  %v429 = vadd.f32 0.0, %v428
  %v430 = vpop.f32.mrf.mxu0
  %431 = vmatprep.mubr.bf16.mxu0 0
  %432 = vmatmul.mubr.bf16.gmra.mxu0 %v304
  %v433 = vpop.f32.mrf.mxu0
  %v434 = vadd.f32 0.0, %v433
  %v435 = vpop.f32.mrf.mxu0
  %v436 = vpop.f32.mrf.mxu0
  %v437 = vadd.f32 0.0, %v436
  %v438 = vpop.f32.mrf.mxu0
  %439 = vmatprep.mubr.bf16.mxu0 0
  %440 = vmatmul.mubr.bf16.gmra.mxu0 %v305
  %v441 = vpop.f32.mrf.mxu0
  %v442 = vadd.f32 0.0, %v441
  %v443 = vpop.f32.mrf.mxu0
  %v444 = vpop.f32.mrf.mxu0
  %v445 = vadd.f32 0.0, %v444
  %v446 = vpop.f32.mrf.mxu0
  %447 = vmatprep.mubr.bf16.mxu0 0
  %448 = vmatmul.mubr.bf16.gmra.mxu0 %v306
  %v449 = vpop.f32.mrf.mxu0
  %v450 = vadd.f32 0.0, %v449
  %v451 = vpop.f32.mrf.mxu0
  %v452 = vpop.f32.mrf.mxu0
  %v453 = vadd.f32 0.0, %v452
  %v454 = vpop.f32.mrf.mxu0
  %455 = vmatprep.mubr.bf16.mxu0 0
  %456 = vmatmul.mubr.bf16.gmra.mxu0 %v307
  %v457 = vpop.f32.mrf.mxu0
  %v458 = vadd.f32 0.0, %v457
  %v459 = vpop.f32.mrf.mxu0
  %v460 = vpop.f32.mrf.mxu0
  %v461 = vadd.f32 0.0, %v460
  %v462 = vpop.f32.mrf.mxu0
  %463 = vmatprep.mubr.bf16.mxu0 0
  %464 = vmatmul.mubr.bf16.gmra.mxu0 %v308
  %v465 = vpop.f32.mrf.mxu0
  %v466 = vadd.f32 0.0, %v465
  %v467 = vpop.f32.mrf.mxu0
  %v468 = vpop.f32.mrf.mxu0
  %v469 = vadd.f32 0.0, %v468
  %v470 = vpop.f32.mrf.mxu0
  %471 = vmatprep.mubr.bf16.mxu0 0
  %472 = vmatmul.mubr.bf16.gmra.mxu0 %v309
  %v473 = vpop.f32.mrf.mxu0
  %v474 = vadd.f32 0.0, %v473
  %v475 = vpop.f32.mrf.mxu0
  %v476 = vpop.f32.mrf.mxu0
  %v477 = vadd.f32 0.0, %v476
  %v478 = vpop.f32.mrf.mxu0
  %479 = vmatprep.mubr.bf16.mxu0 0
  %480 = vmatmul.mubr.bf16.gmra.mxu0 %v310
  %v481 = vpop.f32.mrf.mxu0
  %v482 = vadd.f32 0.0, %v481
  %v483 = vpop.f32.mrf.mxu0
  %v484 = vpop.f32.mrf.mxu0
  %v485 = vadd.f32 0.0, %v484
  %v486 = vpop.f32.mrf.mxu0
  %487 = vdwg.mxu0
  %v488 = vadd.f32 %v311, %v426
  %v489 = vadd.f32 %v312, %v429
  %v490 = vadd.f32 %v313, %v434
  %v491 = vadd.f32 %v314, %v437
  %v492 = vadd.f32 %v315, %v442
  %v493 = vadd.f32 %v316, %v445
  %v494 = vadd.f32 %v317, %v450
  %v495 = vadd.f32 %v318, %v453
  %v496 = vadd.f32 %v319, %v458
  %v497 = vadd.f32 %v320, %v461
  %v498 = vadd.f32 %v321, %v466
  %v499 = vadd.f32 %v322, %v469
  %v500 = vadd.f32 %v323, %v474
  %v501 = vadd.f32 %v324, %v477
  %v502 = vadd.f32 %v325, %v482
  %v503 = vadd.f32 %v326, %v485
  %504 = vst [vmem:[#allocation2] sm:$0xff] %v488
  %505 = vst [vmem:[#allocation2 + $0x8] sm:$0xff] %v489
  %506 = vst [vmem:[#allocation2 + $0x10] sm:$0xff] %v490
  %507 = vst [vmem:[#allocation2 + $0x18] sm:$0xff] %v491
  %508 = vst [vmem:[#allocation2 + $0x20] sm:$0xff] %v492
  %509 = vst [vmem:[#allocation2 + $0x28] sm:$0xff] %v493
  %510 = vst [vmem:[#allocation2 + $0x30] sm:$0xff] %v494
  %511 = vst [vmem:[#allocation2 + $0x38] sm:$0xff] %v495
  %512 = vst [vmem:[#allocation2 + $0x40] sm:$0xff] %v496
  %513 = vst [vmem:[#allocation2 + $0x48] sm:$0xff] %v497
  %514 = vst [vmem:[#allocation2 + $0x50] sm:$0xff] %v498
  %515 = vst [vmem:[#allocation2 + $0x58] sm:$0xff] %v499
  %516 = vst [vmem:[#allocation2 + $0x60] sm:$0xff] %v500
  %517 = vst [vmem:[#allocation2 + $0x68] sm:$0xff] %v501
  %518 = vst [vmem:[#allocation2 + $0x70] sm:$0xff] %v502
  %519 = vst [vmem:[#allocation2 + $0x78] sm:$0xff] %v503
  // Predicated region
  $region30: #{mlp_forward.1} parent=0 // pred_check
    %p520 = pneg %p26
  $region31: #{mlp_forward.1} parent=0 // pred_check_branch
    %522 = sbr.rel (%p520) target = $region33
  $region32: #{mlp_forward.1} parent=0 // pred_region
    %s523 = sld [smem:[#allocation3]]
    %v524 = vld [vmem:[#allocation2] sm:$0xff]
    %v525 = vld [vmem:[#allocation2 + $0x8] sm:$0xff]
    %v526 = vld [vmem:[#allocation2 + $0x10] sm:$0xff]
    %v527 = vld [vmem:[#allocation2 + $0x18] sm:$0xff]
    %v528 = vld [vmem:[#allocation2 + $0x20] sm:$0xff]
    %v529 = vld [vmem:[#allocation2 + $0x28] sm:$0xff]
    %v530 = vld [vmem:[#allocation2 + $0x30] sm:$0xff]
    %v531 = vld [vmem:[#allocation2 + $0x38] sm:$0xff]
    %v532 = vld [vmem:[#allocation2 + $0x40] sm:$0xff]
    %v533 = vld [vmem:[#allocation2 + $0x48] sm:$0xff]
    %v534 = vld [vmem:[#allocation2 + $0x50] sm:$0xff]
    %v535 = vld [vmem:[#allocation2 + $0x58] sm:$0xff]
    %v536 = vld [vmem:[#allocation2 + $0x60] sm:$0xff]
    %v537 = vld [vmem:[#allocation2 + $0x68] sm:$0xff]
    %v538 = vld [vmem:[#allocation2 + $0x70] sm:$0xff]
    %v539 = vld [vmem:[#allocation2 + $0x78] sm:$0xff]
    %v540 = vstv %s523
    %v541 = vmul.f32 %v540, %v524
    %v542 = vmul.f32 %v540, %v525
    %v543 = vmul.f32 %v540, %v526
    %v544 = vmul.f32 %v540, %v527
    %v545 = vmul.f32 %v540, %v528
    %v546 = vmul.f32 %v540, %v529
    %v547 = vmul.f32 %v540, %v530
    %v548 = vmul.f32 %v540, %v531
    %v549 = vmul.f32 %v540, %v532
    %v550 = vmul.f32 %v540, %v533
    %v551 = vmul.f32 %v540, %v534
    %v552 = vmul.f32 %v540, %v535
    %v553 = vmul.f32 %v540, %v536
    %v554 = vmul.f32 %v540, %v537
    %v555 = vmul.f32 %v540, %v538
    %v556 = vmul.f32 %v540, %v539
    %s557 = sld [smem:[#allocation4]]
    %v558 = vld [vmem:[%s5] sm:$0x1]
    %v559 = vstv %s557
    %v560 = vmul.f32 %v559, %v558
    %v562 = vlaneseq
    %v563 = vshrl.u32 %v562, 7
    %v564 = vsub.s32 0, %v563
    %v565 = vrot.slane %v560, %v564
    %v567 = vadd.f32 %v541, %v565
    %v568 = vadd.f32 %v542, %v565
    %v569 = vadd.f32 %v543, %v565
    %v570 = vadd.f32 %v544, %v565
    %v571 = vadd.f32 %v545, %v565
    %v572 = vadd.f32 %v546, %v565
    %v573 = vadd.f32 %v547, %v565
    %v574 = vadd.f32 %v548, %v565
    %v575 = vadd.f32 %v549, %v565
    %v576 = vadd.f32 %v550, %v565
    %v577 = vadd.f32 %v551, %v565
    %v578 = vadd.f32 %v552, %v565
    %v579 = vadd.f32 %v553, %v565
    %v580 = vadd.f32 %v554, %v565
    %v581 = vadd.f32 %v555, %v565
    %v582 = vadd.f32 %v556, %v565
    %583 = vst [vmem:[%s6] sm:$0xff] %v567
    %584 = vst [vmem:[%s6 + $0x8] sm:$0xff] %v568
    %585 = vst [vmem:[%s6 + $0x10] sm:$0xff] %v569
    %586 = vst [vmem:[%s6 + $0x18] sm:$0xff] %v570
    %587 = vst [vmem:[%s6 + $0x20] sm:$0xff] %v571
    %588 = vst [vmem:[%s6 + $0x28] sm:$0xff] %v572
    %589 = vst [vmem:[%s6 + $0x30] sm:$0xff] %v573
    %590 = vst [vmem:[%s6 + $0x38] sm:$0xff] %v574
    %591 = vst [vmem:[%s6 + $0x40] sm:$0xff] %v575
    %592 = vst [vmem:[%s6 + $0x48] sm:$0xff] %v576
    %593 = vst [vmem:[%s6 + $0x50] sm:$0xff] %v577
    %594 = vst [vmem:[%s6 + $0x58] sm:$0xff] %v578
    %595 = vst [vmem:[%s6 + $0x60] sm:$0xff] %v579
    %596 = vst [vmem:[%s6 + $0x68] sm:$0xff] %v580
    %597 = vst [vmem:[%s6 + $0x70] sm:$0xff] %v581
    %598 = vst [vmem:[%s6 + $0x78] sm:$0xff] %v582
  $region33: #{mlp_forward.1} parent=0 // pred_fallthru
    _
  // Predicated region
  $region34: #{mlp_forward.1} parent=0 // pred_check
    _
  $region35: #{mlp_forward.1} parent=0 // pred_check_branch
    %600 = sbr.rel (0) target = $region37
  $region36: #{mlp_forward.1} parent=0 // pred_region
    _
  $region37: #{mlp_forward.1} parent=0 // pred_fallthru
    _
  // Predicated region
  $region38: #{mlp_forward.1} parent=0 // pred_check
    _
  $region39: #{mlp_forward.1} parent=0 // pred_check_branch
    %602 = sbr.rel (0) target = $region41
  $region40: #{mlp_forward.1} parent=0 // pred_region
    _
  $region41: #{mlp_forward.1} parent=0 // pred_fallthru
    _

</llo_original>
